<compile_context>
chip_gen: v7x
topology: tpu7x:2x2x1
jax: 0.10.0
libtpu: 0.0.40
codegen_flags: <defaults>
</compile_context>

<pallas_src>
import functools

import jax
import jax.numpy as jnp
from jax.experimental import pallas as pl
from jax.experimental.pallas import tpu as pltpu

NUM_CLASSES = 18
NUM_FTRS = 128          # stand-in for efficientnet.classifier.in_features
HIDDEN = 512
DROPOUT_P = 0.7
K_PAD = 32              # im2col K (3*3*3 = 27) padded to a sublane multiple
OUT_PAD = 128           # lane-dense padded logits width (sliced to 18 outside)


# ---------------------------------------------------------------- kernel -----
def _fused_kernel(p_ref, cw_ref, cb_ref, w1_ref, b1_ref, w2_ref, b2_ref,
                  mask_ref, o_ref, acc_ref, *, inv_hw):
    """Fused: im2col conv + bias + SiLU + GAP + fc1 + ReLU + dropout + fc2.

    Grid = (batch, spatial_tiles).  acc_ref is a (1, C) f32 accumulator that is
    zeroed at the first spatial step; at the last spatial step the pooled
    feature is pushed through the classifier head and the (1, OUT_PAD) logits
    row is written.
    """
    s = pl.program_id(1)

    @pl.when(s == 0)
    def _init():
        acc_ref[...] = jnp.zeros_like(acc_ref)

    # p_ref block: (1, TM, K_PAD) bf16 ; cw_ref: (K_PAD, C) bf16 -> f32 acc.
    h = jnp.dot(p_ref[0], cw_ref[...], preferred_element_type=jnp.float32)
    h = h + cb_ref[...]
    h = h * jax.nn.sigmoid(h)                      # SiLU (exp rides the EUP)
    acc_ref[...] += jnp.sum(h, axis=0, keepdims=True)

    @pl.when(s == pl.num_programs(1) - 1)
    def _head():
        pooled = acc_ref[...] * inv_hw                              # (1, C)
        z = jnp.dot(pooled, w1_ref[...],
                    preferred_element_type=jnp.float32) + b1_ref[...]
        z = jnp.maximum(z, 0.0)                                     # ReLU
        z = z * mask_ref[0]                    # dropout mask in {0, 1/(1-p)}
        out = jnp.dot(z, w2_ref[...],
                      preferred_element_type=jnp.float32) + b2_ref[...]
        o_ref[0] = out.astype(o_ref.dtype)


# ----------------------------------------------------------------- glue ------
def _im2col(x_nhwc, k=3, stride=2, pad=1):
    """Extract conv patches (pure data rearrangement, stays in plain JAX)."""
    # TODO(synk): in-kernel patch extraction (memory_space=pl.ANY + manual DMA)
    # would avoid materializing the 9x-expanded patches in HBM.
    B, H, W, C = x_nhwc.shape
    xp = jnp.pad(x_nhwc, ((0, 0), (pad, pad), (pad, pad), (0, 0)))
    Ho = (H + 2 * pad - k) // stride + 1
    Wo = (W + 2 * pad - k) // stride + 1
    cols = []
    for di in range(k):
        for dj in range(k):
            cols.append(xp[:, di:di + stride * Ho:stride,
                           dj:dj + stride * Wo:stride, :])
    patches = jnp.concatenate(cols, axis=-1)              # (B, Ho, Wo, k*k*C)
    return patches.reshape(B, Ho * Wo, k * k * C), Ho, Wo


def _pick_spatial_tile(hw, target=1024):
    """Largest divisor of hw that is a multiple of 8 and <= target."""
    for t in range(min(target, hw), 7, -1):
        if hw % t == 0 and t % 8 == 0:
            return t
    return hw   # fall back: block equals full dim (always legal)


def init_params(key):
    k = jax.random.split(key, 6)
    conv_w = 0.1 * jax.random.normal(k[0], (3 * 3 * 3, NUM_FTRS), jnp.float32)
    conv_b = 0.1 * jax.random.normal(k[1], (1, NUM_FTRS), jnp.float32)
    fc1_w = 0.05 * jax.random.normal(k[2], (NUM_FTRS, HIDDEN), jnp.float32)
    fc1_b = 0.05 * jax.random.normal(k[3], (1, HIDDEN), jnp.float32)
    fc2_w = 0.05 * jax.random.normal(k[4], (HIDDEN, NUM_CLASSES), jnp.float32)
    fc2_b = 0.05 * jax.random.normal(k[5], (1, NUM_CLASSES), jnp.float32)
    return dict(conv_w=conv_w, conv_b=conv_b,
                fc1_w=fc1_w, fc1_b=fc1_b, fc2_w=fc2_w, fc2_b=fc2_b)


def modified_efficient_forward(params, x_nchw, *, dropout_key=None,
                               training=True):
    B = x_nchw.shape[0]
    x = jnp.transpose(x_nchw, (0, 2, 3, 1)).astype(jnp.float32)   # NCHW -> NHWC

    # --- im2col for the stem conv 3x3/s2 (data rearrangement only) -----------
    patches, Ho, Wo = _im2col(x, k=3, stride=2, pad=1)
    HW = Ho * Wo
    kk = patches.shape[-1]
    patches = jnp.pad(patches, ((0, 0), (0, 0), (0, K_PAD - kk)))
    patches = patches.astype(jnp.bfloat16)
    conv_w = jnp.pad(params["conv_w"], ((0, K_PAD - kk), (0, 0)))
    conv_w = conv_w.astype(jnp.bfloat16)
    conv_b = params["conv_b"].astype(jnp.float32)

    # --- dropout mask (host-side jax.random; deterministic) ------------------
    if training:
        if dropout_key is None:
            dropout_key = jax.random.PRNGKey(0)
        keep = jax.random.bernoulli(dropout_key, 1.0 - DROPOUT_P, (B, HIDDEN))
        mask = keep.astype(jnp.float32) * (1.0 / (1.0 - DROPOUT_P))
    else:
        mask = jnp.ones((B, HIDDEN), jnp.float32)
    mask = mask.reshape(B, 1, HIDDEN)

    # --- padded (lane-dense) fc2 ---------------------------------------------
    fc2_w = jnp.pad(params["fc2_w"], ((0, 0), (0, OUT_PAD - NUM_CLASSES)))
    fc2_b = jnp.pad(params["fc2_b"], ((0, 0), (0, OUT_PAD - NUM_CLASSES)))

    TM = _pick_spatial_tile(HW)
    grid = (B, HW // TM)
    cost = pl.CostEstimate(
        flops=(2 * B * HW * K_PAD * NUM_FTRS
               + 2 * B * (NUM_FTRS * HIDDEN + HIDDEN * OUT_PAD)),
        transcendentals=B * HW * NUM_FTRS,
        bytes_accessed=(patches.size * 2 + conv_w.size * 2 + conv_b.size * 4
                        + params["fc1_w"].size * 4 + params["fc1_b"].size * 4
                        + fc2_w.size * 4 + fc2_b.size * 4
                        + mask.size * 4 + B * OUT_PAD * 4),
    )

    logits_pad = pl.pallas_call(
        functools.partial(_fused_kernel, inv_hw=1.0 / float(HW)),
        out_shape=jax.ShapeDtypeStruct((B, 1, OUT_PAD), jnp.float32),
        grid_spec=pltpu.PrefetchScalarGridSpec(
            num_scalar_prefetch=0,
            grid=grid,
            in_specs=[
                pl.BlockSpec((1, TM, K_PAD), lambda b, s: (b, s, 0)),
                pl.BlockSpec((K_PAD, NUM_FTRS), lambda b, s: (0, 0)),
                pl.BlockSpec((1, NUM_FTRS), lambda b, s: (0, 0)),
                pl.BlockSpec((NUM_FTRS, HIDDEN), lambda b, s: (0, 0)),
                pl.BlockSpec((1, HIDDEN), lambda b, s: (0, 0)),
                pl.BlockSpec((HIDDEN, OUT_PAD), lambda b, s: (0, 0)),
                pl.BlockSpec((1, OUT_PAD), lambda b, s: (0, 0)),
                pl.BlockSpec((1, 1, HIDDEN), lambda b, s: (b, 0, 0)),
            ],
            out_specs=pl.BlockSpec((1, 1, OUT_PAD), lambda b, s: (b, 0, 0)),
            scratch_shapes=[pltpu.VMEM((1, NUM_FTRS), jnp.float32)],
        ),
        compiler_params=pltpu.CompilerParams(
            dimension_semantics=("parallel", "arbitrary")),
        cost_estimate=cost,
    )(patches, conv_w, conv_b,
      params["fc1_w"], params["fc1_b"], fc2_w, fc2_b, mask)

    # x = efficient(input); x = x.view(B, -1); fc head computed in-kernel.
    return logits_pad.reshape(B, OUT_PAD)[:, :NUM_CLASSES]


if __name__ == "__main__":
    key = jax.random.PRNGKey(0)
    k_in, k_par, k_drop = jax.random.split(key, 3)
    # small shapes consistent with the module: NCHW image batch
    x = jax.random.normal(k_in, (2, 3, 16, 16), jnp.float32)
    params = init_params(k_par)

    out = modified_efficient_forward(params, x, dropout_key=k_drop,
                                     training=True)
    out = jax.block_until_ready(out)
    assert out.shape == (2, NUM_CLASSES), out.shape
    assert bool(jnp.all(jnp.isfinite(out)))
    print("KERNEL_OK")
</pallas_src>

<mosaic_0001>
module attributes {stable_mosaic.version = 11 : i64} {
  func.func @_fused_kernel(%arg0: i32, %arg1: i32, %arg2: memref<1x64x32xbf16, #tpu.memory_space<vmem>>, %arg3: memref<32x128xbf16, #tpu.memory_space<vmem>>, %arg4: memref<1x128xf32, #tpu.memory_space<vmem>>, %arg5: memref<128x512xf32, #tpu.memory_space<vmem>>, %arg6: memref<1x512xf32, #tpu.memory_space<vmem>>, %arg7: memref<512x128xf32, #tpu.memory_space<vmem>>, %arg8: memref<1x128xf32, #tpu.memory_space<vmem>>, %arg9: memref<1x1x512xf32, #tpu.memory_space<vmem>>, %arg10: memref<1x1x128xf32, #tpu.memory_space<vmem>>, %arg11: memref<1x128xf32, #tpu.memory_space<vmem>>) attributes {dimension_semantics = [#tpu.dimension_semantics<parallel>, #tpu.dimension_semantics<arbitrary>], iteration_bounds = array<i64: 2, 1>, scalar_prefetch = 0 : i64, scratch_operands = 1 : i64, tpu.core_type = #tpu.core_type<tc>, window_params = [{transform_indices = @transform_0, window_bounds = array<i64: 1, 64, 32>}, {pipeline_mode = #tpu.pipeline_mode<synchronous>, transform_indices = @transform_1, window_bounds = array<i64: 32, 128>}, {pipeline_mode = #tpu.pipeline_mode<synchronous>, transform_indices = @transform_2, window_bounds = array<i64: 1, 128>}, {pipeline_mode = #tpu.pipeline_mode<synchronous>, transform_indices = @transform_3, window_bounds = array<i64: 128, 512>}, {pipeline_mode = #tpu.pipeline_mode<synchronous>, transform_indices = @transform_4, window_bounds = array<i64: 1, 512>}, {pipeline_mode = #tpu.pipeline_mode<synchronous>, transform_indices = @transform_5, window_bounds = array<i64: 512, 128>}, {pipeline_mode = #tpu.pipeline_mode<synchronous>, transform_indices = @transform_6, window_bounds = array<i64: 1, 128>}, {transform_indices = @transform_7, window_bounds = array<i64: 1, 1, 512>}, {transform_indices = @transform_8, window_bounds = array<i64: 1, 1, 128>}]} {
    %c0_i32 = arith.constant 0 : i32
    %0 = arith.cmpi eq, %arg1, %c0_i32 : i32
    %1 = arith.extui %0 : i1 to i32
    %c0_i32_0 = arith.constant 0 : i32
    %2 = arith.cmpi ne, %1, %c0_i32_0 : i32
    scf.if %2 {
      %cst_15 = arith.constant 0.000000e+00 : f32
      %24 = vector.broadcast %cst_15 : f32 to vector<1x128xf32>
      %c0_16 = arith.constant 0 : index
      %c0_17 = arith.constant 0 : index
      %25 = vector.load %arg11[%c0_16, %c0_17] : memref<1x128xf32, #tpu.memory_space<vmem>>, vector<1x128xf32>
      tpu.vector_store %arg11[%c0_16, %c0_17], %24 {strides = array<i32>} : memref<1x128xf32, #tpu.memory_space<vmem>>, vector<1x128xf32>,
    } else {
    }
    %c0 = arith.constant 0 : index
    %c0_1 = arith.constant 0 : index
    %c0_2 = arith.constant 0 : index
    %3 = vector.load %arg2[%c0, %c0_1, %c0_2] : memref<1x64x32xbf16, #tpu.memory_space<vmem>>, vector<1x64x32xbf16>
    %4 = vector.shape_cast %3 : vector<1x64x32xbf16> to vector<64x32xbf16>
    %c0_3 = arith.constant 0 : index
    %c0_4 = arith.constant 0 : index
    %5 = vector.load %arg3[%c0_3, %c0_4] : memref<32x128xbf16, #tpu.memory_space<vmem>>, vector<32x128xbf16>
    %cst = arith.constant dense<0.000000e+00> : vector<64x128xf32>
    %6 = tpu.matmul %4, %5, %cst {dimension_numbers = #tpu.dot_dimension_numbers<[1], [0], [0], [1], [0, 0, 1, 1], [], []>} : vector<64x32xbf16>, vector<32x128xbf16>, vector<64x128xf32> -> vector<64x128xf32>
    %c0_5 = arith.constant 0 : index
    %c0_6 = arith.constant 0 : index
    %7 = vector.load %arg4[%c0_5, %c0_6] : memref<1x128xf32, #tpu.memory_space<vmem>>, vector<1x128xf32>
    %8 = vector.broadcast %7 : vector<1x128xf32> to vector<64x128xf32>
    %9 = arith.addf %6, %8 : vector<64x128xf32>
    %10 = arith.negf %9 : vector<64x128xf32>
    %11 = math.exp %10 : vector<64x128xf32>
    %cst_7 = arith.constant 1.000000e+00 : f32
    %12 = vector.broadcast %cst_7 : f32 to vector<64x128xf32>
    %13 = arith.addf %12, %11 : vector<64x128xf32>
    %14 = arith.divf %12, %13 : vector<64x128xf32>
    %15 = arith.mulf %9, %14 : vector<64x128xf32>
    %c0_8 = arith.constant 0 : index
    %c0_9 = arith.constant 0 : index
    %16 = vector.load %arg11[%c0_8, %c0_9] : memref<1x128xf32, #tpu.memory_space<vmem>>, vector<1x128xf32>
    %cst_10 = arith.constant dense<0.000000e+00> : vector<128xf32>
    %17 = vector.multi_reduction <add>, %15, %cst_10 [0] : vector<64x128xf32> to vector<128xf32>
    %18 = vector.shape_cast %17 : vector<128xf32> to vector<1x128xf32>
    %19 = arith.addf %16, %18 : vector<1x128xf32>
    %c0_11 = arith.constant 0 : index
    %c0_12 = arith.constant 0 : index
    %20 = vector.load %arg11[%c0_11, %c0_12] : memref<1x128xf32, #tpu.memory_space<vmem>>, vector<1x128xf32>
    tpu.vector_store %arg11[%c0_11, %c0_12], %19 {strides = array<i32>} : memref<1x128xf32, #tpu.memory_space<vmem>>, vector<1x128xf32>,
    %c0_i32_13 = arith.constant 0 : i32
    %21 = arith.cmpi eq, %arg1, %c0_i32_13 : i32
    %22 = arith.extui %21 : i1 to i32
    %c0_i32_14 = arith.constant 0 : i32
    %23 = arith.cmpi ne, %22, %c0_i32_14 : i32
    scf.if %23 {
      %c0_15 = arith.constant 0 : index
      %c0_16 = arith.constant 0 : index
      %24 = vector.load %arg11[%c0_15, %c0_16] : memref<1x128xf32, #tpu.memory_space<vmem>>, vector<1x128xf32>
      %cst_17 = arith.constant 1.562500e-02 : f32
      %25 = vector.broadcast %cst_17 : f32 to vector<1x128xf32>
      %26 = arith.mulf %24, %25 : vector<1x128xf32>
      %c0_18 = arith.constant 0 : index
      %c0_19 = arith.constant 0 : index
      %27 = vector.load %arg5[%c0_18, %c0_19] : memref<128x512xf32, #tpu.memory_space<vmem>>, vector<128x512xf32>
      %cst_20 = arith.constant dense<0.000000e+00> : vector<1x512xf32>
      %28 = tpu.matmul %26, %27, %cst_20 {dimension_numbers = #tpu.dot_dimension_numbers<[1], [0], [0], [1], [0, 0, 1, 1], [], []>} : vector<1x128xf32>, vector<128x512xf32>, vector<1x512xf32> -> vector<1x512xf32>
      %c0_21 = arith.constant 0 : index
      %c0_22 = arith.constant 0 : index
      %29 = vector.load %arg6[%c0_21, %c0_22] : memref<1x512xf32, #tpu.memory_space<vmem>>, vector<1x512xf32>
      %30 = arith.addf %28, %29 : vector<1x512xf32>
      %cst_23 = arith.constant 0.000000e+00 : f32
      %31 = vector.broadcast %cst_23 : f32 to vector<1x512xf32>
      %32 = arith.maximumf %30, %31 : vector<1x512xf32>
      %c0_24 = arith.constant 0 : index
      %c0_25 = arith.constant 0 : index
      %c0_26 = arith.constant 0 : index
      %33 = vector.load %arg9[%c0_24, %c0_25, %c0_26] : memref<1x1x512xf32, #tpu.memory_space<vmem>>, vector<1x1x512xf32>
      %34 = vector.shape_cast %33 : vector<1x1x512xf32> to vector<1x512xf32>
      %35 = arith.mulf %32, %34 : vector<1x512xf32>
      %c0_27 = arith.constant 0 : index
      %c0_28 = arith.constant 0 : index
      %36 = vector.load %arg7[%c0_27, %c0_28] : memref<512x128xf32, #tpu.memory_space<vmem>>, vector<512x128xf32>
      %cst_29 = arith.constant dense<0.000000e+00> : vector<1x128xf32>
      %37 = tpu.matmul %35, %36, %cst_29 {dimension_numbers = #tpu.dot_dimension_numbers<[1], [0], [0], [1], [0, 0, 1, 1], [], []>} : vector<1x512xf32>, vector<512x128xf32>, vector<1x128xf32> -> vector<1x128xf32>
      %c0_30 = arith.constant 0 : index
      %c0_31 = arith.constant 0 : index
      %38 = vector.load %arg8[%c0_30, %c0_31] : memref<1x128xf32, #tpu.memory_space<vmem>>, vector<1x128xf32>
      %39 = arith.addf %37, %38 : vector<1x128xf32>
      %c0_32 = arith.constant 0 : index
      %c0_33 = arith.constant 0 : index
      %c0_34 = arith.constant 0 : index
      %40 = vector.load %arg10[%c0_32, %c0_33, %c0_34] : memref<1x1x128xf32, #tpu.memory_space<vmem>>, vector<1x1x128xf32>
      %41 = vector.shape_cast %40 : vector<1x1x128xf32> to vector<1x128xf32>
      %42 = vector.shape_cast %39 : vector<1x128xf32> to vector<1x1x128xf32>
      tpu.vector_store %arg10[%c0_32, %c0_33, %c0_34], %42 {strides = array<i32>} : memref<1x1x128xf32, #tpu.memory_space<vmem>>, vector<1x1x128xf32>,
    } else {
    }
    return
  }
  func.func @transform_0(%arg0: i32, %arg1: i32) -> (i32, i32, i32) {
    %c0_i32 = arith.constant 0 : i32
    %c0_i32_0 = arith.constant 0 : i32
    return %arg0, %arg1, %c0_i32 : i32, i32, i32
  }
  func.func @transform_1(%arg0: i32, %arg1: i32) -> (i32, i32) {
    %c0_i32 = arith.constant 0 : i32
    %c0_i32_0 = arith.constant 0 : i32
    %c0_i32_1 = arith.constant 0 : i32
    return %c0_i32, %c0_i32_0 : i32, i32
  }
  func.func @transform_2(%arg0: i32, %arg1: i32) -> (i32, i32) {
    %c0_i32 = arith.constant 0 : i32
    %c0_i32_0 = arith.constant 0 : i32
    %c0_i32_1 = arith.constant 0 : i32
    return %c0_i32, %c0_i32_0 : i32, i32
  }
  func.func @transform_3(%arg0: i32, %arg1: i32) -> (i32, i32) {
    %c0_i32 = arith.constant 0 : i32
    %c0_i32_0 = arith.constant 0 : i32
    %c0_i32_1 = arith.constant 0 : i32
    return %c0_i32, %c0_i32_0 : i32, i32
  }
  func.func @transform_4(%arg0: i32, %arg1: i32) -> (i32, i32) {
    %c0_i32 = arith.constant 0 : i32
    %c0_i32_0 = arith.constant 0 : i32
    %c0_i32_1 = arith.constant 0 : i32
    return %c0_i32, %c0_i32_0 : i32, i32
  }
  func.func @transform_5(%arg0: i32, %arg1: i32) -> (i32, i32) {
    %c0_i32 = arith.constant 0 : i32
    %c0_i32_0 = arith.constant 0 : i32
    %c0_i32_1 = arith.constant 0 : i32
    return %c0_i32, %c0_i32_0 : i32, i32
  }
  func.func @transform_6(%arg0: i32, %arg1: i32) -> (i32, i32) {
    %c0_i32 = arith.constant 0 : i32
    %c0_i32_0 = arith.constant 0 : i32
    %c0_i32_1 = arith.constant 0 : i32
    return %c0_i32, %c0_i32_0 : i32, i32
  }
  func.func @transform_7(%arg0: i32, %arg1: i32) -> (i32, i32, i32) {
    %c0_i32 = arith.constant 0 : i32
    %c0_i32_0 = arith.constant 0 : i32
    %c0_i32_1 = arith.constant 0 : i32
    return %arg0, %c0_i32, %c0_i32_0 : i32, i32, i32
  }
  func.func @transform_8(%arg0: i32, %arg1: i32) -> (i32, i32, i32) {
    %c0_i32 = arith.constant 0 : i32
    %c0_i32_0 = arith.constant 0 : i32
    %c0_i32_1 = arith.constant 0 : i32
    return %arg0, %c0_i32, %c0_i32_0 : i32, i32, i32
  }
}

</mosaic_0001>

<llo_original>
// kernel: tpu_custom_call.1
$region0: #{tpu_custom_call.1}
  #allocation0 [shape = 'u32[]', space=smem, size = 0x4, offset = 0x4, fixed_abs, tag = 'smem constant byte address 0x4 - core index']
  #allocation1 [shape = 'u32[144,128]{1,0:T(1,128)}', space=vmem, size = 0x12000, scoped, tag = 'internal scratch']
  #allocation2 [shape = 'f32[1,128]{1,0:T(1,128)}', space=vmem, size = 0x200, scoped, tag = 'scratch operand']
  %s0 = inlined_call_operand.vmem [shape: bf16[2,64,32], index: 0, kind: input, shape index: {}]
  %s1 = inlined_call_operand.vmem [shape: bf16[32,128], index: 1, kind: input, shape index: {}]
  %s2 = inlined_call_operand.vmem [shape: f32[1,128], index: 2, kind: input, shape index: {}]
  %s3 = inlined_call_operand.hbm [shape: f32[128,512], index: 3, kind: input, shape index: {}]
  %s4 = inlined_call_operand.vmem [shape: f32[1,512], index: 4, kind: input, shape index: {}]
  %s5 = inlined_call_operand.hbm [shape: f32[512,128], index: 5, kind: input, shape index: {}]
  %s6 = inlined_call_operand.vmem [shape: f32[1,128], index: 6, kind: input, shape index: {}]
  %s7 = inlined_call_operand.vmem [shape: f32[2,1,512], index: 7, kind: input, shape index: {}]
  %s8 = inlined_call_operand.hbm [shape: f32[2,1,128], index: 8, kind: output, shape index: {}]
  %s9 = sld [smem:[#allocation0]]
  $region81: #{tpu_custom_call.1} parent=0
    _
  %s11 = ssub.s32 1, %s9
  %s12 = scalar_select 0, %s11, %s9
  $region1: #{tpu_custom_call.1} parent=0
    #allocation3 [shape = 'u8[262144]{0}', space=vmem, size = 0x40000, scoped, tag = 'input window, operand 3, single buffered']
    #allocation4 [shape = 's32[2]{0}', space=sflag, size = 0x8, scoped, tag = 'scoped memory for tpu_custom_call.1']
    #allocation5 [shape = 's32[2]{0}', space=sflag, size = 0x8, scoped, tag = 'scoped memory for tpu_custom_call.1']
    #allocation6 [shape = 'u8[262144]{0}', space=vmem, size = 0x40000, scoped, tag = 'input window, operand 5, single buffered']
    #allocation7 [shape = 's32[1]{0}', space=sflag, size = 0x4, scoped, tag = 'scoped memory for tpu_custom_call.1']
    #allocation8 [shape = 'u8[1024]{0}', space=vmem, size = 0x400, scoped, tag = 'output window, operand 0']
    %13 = vsyncpa [#allocation4], 0
    %14 = vsyncpa [#allocation7], 0
    %15 = vsyncpa [#allocation5], 0
    %s16 = scalar_lea.sflag [#allocation5], 1
    %17 = vsyncpa %s16, 0
    loop: start=0, step=1, limit=4
    $region2: #{tpu_custom_call.1} parent=1 // loop_pre_header
      _
    $region3: #{tpu_custom_call.1} parent=1 // loop_header
      %s19 = sphi 0, %s23
      %p20 = scmp.ge.s32.totalorder %s19, 4
      %s26 = sphi 0, %s38
      %s27 = sphi 0, %s34
      %s28 = sphi 0, %s26
      %s29 = sphi 0, %s27
      %s30 = sphi 0, %s28
      %s31 = sphi 0, %s29
      %s43 = sphi 0, %s45
      %s46 = sphi 0, %s43
      %s47 = sphi 0, %s46
      %s63 = sphi 0, %s47
      %s67 = sphi 0, %s67
      %s69 = sphi 0, %s67
      %s70 = sphi 0, %s69
      %s84 = sphi 0, %s70
      %s88 = sphi 0, %s88
      %s90 = sphi 0, %s88
      %s91 = sphi 0, %s90
      %s105 = sphi 0, %s91
      %s109 = sphi 0, %s109
      %s111 = sphi 0, %s109
      %s112 = sphi 0, %s111
      %s126 = sphi 0, %s112
      %s130 = sphi 0, %s130
      %s132 = sphi 0, %s130
      %s133 = sphi 0, %s132
      %s147 = sphi 0, %s133
      %s151 = sphi 0, %s151
      %s153 = sphi 0, %s151
      %s154 = sphi 0, %s153
      %s168 = sphi 0, %s154
      %s172 = sphi 0, %s172
      %s174 = sphi 0, %s172
      %s175 = sphi 0, %s174
      %s189 = sphi 0, %s175
      %s195 = sphi 0, %s197
      %s198 = sphi 0, %s195
      %s199 = sphi 0, %s198
      %s215 = sphi 0, %s199
      %s221 = sphi 0, %s223
      %s224 = sphi 0, %s221
      %s225 = sphi 0, %s224
      %s241 = sphi 0, %s225
    $region4: #{tpu_custom_call.1} parent=1 // loop_header_branch
      %22 = sbr.rel (%p20) target = $region8
    $region5: #{tpu_custom_call.1} parent=1 // loop_body
      %s24 = ssub.s32 %s19, 1
      %s25 = ssub.s32 %s19, 2
      %s32 = sadd.s32 1, %s27
      %p33 = scmp.ge.s32.totalorder %s32, 1
      %s34 = scalar_select %p33, 0, %s32
      %s35 = sadd.s32 1, %s26
      %s36 = scalar_select %p33, %s35, %s26
      %p37 = scmp.ge.s32.totalorder %s36, 2
      %s38 = scalar_select %p37, 0, %s36
      %s39 = ssub.s32 %s26, %s38
      %s40 = ssub.s32 %s27, %s34
      %s41 = sor.u32 %s39, %s40
      %p42 = scmp.eq.s32.totalorder %s41, 0
      %s44 = sadd.s32 %s43, 1
      %s45 = scalar_select %p42, %s43, %s44
      %p48 = pneg %p42
      %p49 = scmp.eq.s32.totalorder %s19, 1
      %p50 = por %p48, %p49
      %p51 = scmp.ne.s32.totalorder %s43, %s46
      %p52 = scmp.eq.s32.totalorder %s19, 0
      %p53 = por %p51, %p52
      %p54 = scmp.ne.s32.totalorder %s43, %s46
      %p55 = scmp.eq.s32.totalorder %s24, 1
      %p56 = por %p54, %p55
      %p57 = scmp.ne.s32.totalorder %s46, %s47
      %p58 = scmp.eq.s32.totalorder %s24, 0
      %p59 = por %p57, %p58
      %p60 = scmp.ne.s32.totalorder %s46, %s47
      %p61 = scmp.eq.s32.totalorder %s25, 1
      %p62 = por %p60, %p61
      %p64 = scmp.ne.s32.totalorder %s47, %s63
      %p65 = scmp.eq.s32.totalorder %s25, 0
      %p66 = por %p64, %p65
      %s68 = sadd.s32 %s67, 1
      %p71 = scmp.eq.s32.totalorder %s19, 1
      %p72 = scmp.ne.s32.totalorder %s67, %s69
      %p73 = scmp.eq.s32.totalorder %s19, 0
      %p74 = por %p72, %p73
      %p75 = scmp.ne.s32.totalorder %s67, %s69
      %p76 = scmp.eq.s32.totalorder %s24, 1
      %p77 = por %p75, %p76
      %p78 = scmp.ne.s32.totalorder %s69, %s70
      %p79 = scmp.eq.s32.totalorder %s24, 0
      %p80 = por %p78, %p79
      %p81 = scmp.ne.s32.totalorder %s69, %s70
      %p82 = scmp.eq.s32.totalorder %s25, 1
      %p83 = por %p81, %p82
      %p85 = scmp.ne.s32.totalorder %s70, %s84
      %p86 = scmp.eq.s32.totalorder %s25, 0
      %p87 = por %p85, %p86
      %s89 = sadd.s32 %s88, 1
      %p92 = scmp.eq.s32.totalorder %s19, 1
      %p93 = scmp.ne.s32.totalorder %s88, %s90
      %p94 = scmp.eq.s32.totalorder %s19, 0
      %p95 = por %p93, %p94
      %p96 = scmp.ne.s32.totalorder %s88, %s90
      %p97 = scmp.eq.s32.totalorder %s24, 1
      %p98 = por %p96, %p97
      %p99 = scmp.ne.s32.totalorder %s90, %s91
      %p100 = scmp.eq.s32.totalorder %s24, 0
      %p101 = por %p99, %p100
      %p102 = scmp.ne.s32.totalorder %s90, %s91
      %p103 = scmp.eq.s32.totalorder %s25, 1
      %p104 = por %p102, %p103
      %p106 = scmp.ne.s32.totalorder %s91, %s105
      %p107 = scmp.eq.s32.totalorder %s25, 0
      %p108 = por %p106, %p107
      %s110 = sadd.s32 %s109, 1
      %p113 = scmp.eq.s32.totalorder %s19, 1
      %p114 = scmp.ne.s32.totalorder %s109, %s111
      %p115 = scmp.eq.s32.totalorder %s19, 0
      %p116 = por %p114, %p115
      %p117 = scmp.ne.s32.totalorder %s109, %s111
      %p118 = scmp.eq.s32.totalorder %s24, 1
      %p119 = por %p117, %p118
      %p120 = scmp.ne.s32.totalorder %s111, %s112
      %p121 = scmp.eq.s32.totalorder %s24, 0
      %p122 = por %p120, %p121
      %p123 = scmp.ne.s32.totalorder %s111, %s112
      %p124 = scmp.eq.s32.totalorder %s25, 1
      %p125 = por %p123, %p124
      %p127 = scmp.ne.s32.totalorder %s112, %s126
      %p128 = scmp.eq.s32.totalorder %s25, 0
      %p129 = por %p127, %p128
      %s131 = sadd.s32 %s130, 1
      %p134 = scmp.eq.s32.totalorder %s19, 1
      %p135 = scmp.ne.s32.totalorder %s130, %s132
      %p136 = scmp.eq.s32.totalorder %s19, 0
      %p137 = por %p135, %p136
      %p138 = scmp.ne.s32.totalorder %s130, %s132
      %p139 = scmp.eq.s32.totalorder %s24, 1
      %p140 = por %p138, %p139
      %p141 = scmp.ne.s32.totalorder %s132, %s133
      %p142 = scmp.eq.s32.totalorder %s24, 0
      %p143 = por %p141, %p142
      %p144 = scmp.ne.s32.totalorder %s132, %s133
      %p145 = scmp.eq.s32.totalorder %s25, 1
      %p146 = por %p144, %p145
      %p148 = scmp.ne.s32.totalorder %s133, %s147
      %p149 = scmp.eq.s32.totalorder %s25, 0
      %p150 = por %p148, %p149
      %s152 = sadd.s32 %s151, 1
      %p155 = scmp.eq.s32.totalorder %s19, 1
      %p156 = scmp.ne.s32.totalorder %s151, %s153
      %p157 = scmp.eq.s32.totalorder %s19, 0
      %p158 = por %p156, %p157
      %p159 = scmp.ne.s32.totalorder %s151, %s153
      %p160 = scmp.eq.s32.totalorder %s24, 1
      %p161 = por %p159, %p160
      %p162 = scmp.ne.s32.totalorder %s153, %s154
      %p163 = scmp.eq.s32.totalorder %s24, 0
      %p164 = por %p162, %p163
      %p165 = scmp.ne.s32.totalorder %s153, %s154
      %p166 = scmp.eq.s32.totalorder %s25, 1
      %p167 = por %p165, %p166
      %p169 = scmp.ne.s32.totalorder %s154, %s168
      %p170 = scmp.eq.s32.totalorder %s25, 0
      %p171 = por %p169, %p170
      %s173 = sadd.s32 %s172, 1
      %p176 = scmp.eq.s32.totalorder %s19, 1
      %p177 = scmp.ne.s32.totalorder %s172, %s174
      %p178 = scmp.eq.s32.totalorder %s19, 0
      %p179 = por %p177, %p178
      %p180 = scmp.ne.s32.totalorder %s172, %s174
      %p181 = scmp.eq.s32.totalorder %s24, 1
      %p182 = por %p180, %p181
      %p183 = scmp.ne.s32.totalorder %s174, %s175
      %p184 = scmp.eq.s32.totalorder %s24, 0
      %p185 = por %p183, %p184
      %p186 = scmp.ne.s32.totalorder %s174, %s175
      %p187 = scmp.eq.s32.totalorder %s25, 1
      %p188 = por %p186, %p187
      %p190 = scmp.ne.s32.totalorder %s175, %s189
      %p191 = scmp.eq.s32.totalorder %s25, 0
      %p192 = por %p190, %p191
      %s193 = ssub.s32 %s26, %s38
      %p194 = scmp.eq.s32.totalorder %s193, 0
      %s196 = sadd.s32 %s195, 1
      %s197 = scalar_select %p194, %s195, %s196
      %p200 = pneg %p194
      %p201 = scmp.eq.s32.totalorder %s19, 1
      %p202 = por %p200, %p201
      %p203 = scmp.ne.s32.totalorder %s195, %s198
      %p204 = scmp.eq.s32.totalorder %s19, 0
      %p205 = por %p203, %p204
      %p206 = scmp.ne.s32.totalorder %s195, %s198
      %p207 = scmp.eq.s32.totalorder %s24, 1
      %p208 = por %p206, %p207
      %p209 = scmp.ne.s32.totalorder %s198, %s199
      %p210 = scmp.eq.s32.totalorder %s24, 0
      %p211 = por %p209, %p210
      %p212 = scmp.ne.s32.totalorder %s198, %s199
      %p213 = scmp.eq.s32.totalorder %s25, 1
      %p214 = por %p212, %p213
      %p216 = scmp.ne.s32.totalorder %s199, %s215
      %p217 = scmp.eq.s32.totalorder %s25, 0
      %p218 = por %p216, %p217
      %s219 = ssub.s32 %s26, %s38
      %p220 = scmp.eq.s32.totalorder %s219, 0
      %s222 = sadd.s32 %s221, 1
      %s223 = scalar_select %p220, %s221, %s222
      %p226 = pneg %p220
      %p227 = scmp.eq.s32.totalorder %s19, 1
      %p228 = por %p226, %p227
      %p229 = scmp.ne.s32.totalorder %s221, %s224
      %p230 = scmp.eq.s32.totalorder %s19, 0
      %p231 = por %p229, %p230
      %p232 = scmp.ne.s32.totalorder %s221, %s224
      %p233 = scmp.eq.s32.totalorder %s24, 1
      %p234 = por %p232, %p233
      %p235 = scmp.ne.s32.totalorder %s224, %s225
      %p236 = scmp.eq.s32.totalorder %s24, 0
      %p237 = por %p235, %p236
      %p238 = scmp.ne.s32.totalorder %s224, %s225
      %p239 = scmp.eq.s32.totalorder %s25, 1
      %p240 = por %p238, %p239
      %p242 = scmp.ne.s32.totalorder %s225, %s241
      %p243 = scmp.eq.s32.totalorder %s25, 0
      %p244 = por %p242, %p243
      %p245 = scmp.le.s32.totalorder 1, %s19
      %p246 = scmp.lt.s32.totalorder %s19, 3
      %p247 = pnand %p245, %p246
      %p248 = pneg %p247
      // Predicated region
      $region9: #{tpu_custom_call.1} parent=5 // pred_check
        _
      $region10: #{tpu_custom_call.1} parent=5 // pred_check_branch
        %250 = sbr.rel (%p247) target = $region12
      $region11: #{tpu_custom_call.1} parent=5 // pred_region
        %s251 = ssub.s32 %s19, 1
        // Predicated region
        $region13: #{tpu_custom_call.1} parent=11 // pred_check
          %p252 = pneg %p80
        $region14: #{tpu_custom_call.1} parent=11 // pred_check_branch
          %254 = sbr.rel (%p252) target = $region16
        $region15: #{tpu_custom_call.1} parent=11 // pred_region
          _
        $region16: #{tpu_custom_call.1} parent=11 // pred_fallthru
          _
        // Predicated region
        $region17: #{tpu_custom_call.1} parent=11 // pred_check
          %p255 = pneg %p101
        $region18: #{tpu_custom_call.1} parent=11 // pred_check_branch
          %257 = sbr.rel (%p255) target = $region20
        $region19: #{tpu_custom_call.1} parent=11 // pred_region
          _
        $region20: #{tpu_custom_call.1} parent=11 // pred_fallthru
          _
        // Predicated region
        $region21: #{tpu_custom_call.1} parent=11 // pred_check
          %p258 = pneg %p122
        $region22: #{tpu_custom_call.1} parent=11 // pred_check_branch
          %260 = sbr.rel (%p258) target = $region24
        $region23: #{tpu_custom_call.1} parent=11 // pred_region
          %s262 = ssub.s32 8192, 8192
          %263 = vsyncadd [#allocation4], %s262
          %s264 = sshll.u32 [#allocation3], 4
          %s265 = int_to_ptr.vmem [resolvable:$true] %s264
          %270 = dma.hbm_to_vmem [thread:$0]  %s3, 8192, %s265, [#allocation4], 512, 512, 32
        $region24: #{tpu_custom_call.1} parent=11 // pred_fallthru
          _
        // Predicated region
        $region25: #{tpu_custom_call.1} parent=11 // pred_check
          %p271 = pneg %p143
        $region26: #{tpu_custom_call.1} parent=11 // pred_check_branch
          %273 = sbr.rel (%p271) target = $region28
        $region27: #{tpu_custom_call.1} parent=11 // pred_region
          _
        $region28: #{tpu_custom_call.1} parent=11 // pred_fallthru
          _
        // Predicated region
        $region29: #{tpu_custom_call.1} parent=11 // pred_check
          %p274 = pneg %p164
        $region30: #{tpu_custom_call.1} parent=11 // pred_check_branch
          %276 = sbr.rel (%p274) target = $region32
        $region31: #{tpu_custom_call.1} parent=11 // pred_region
          %s278 = ssub.s32 8192, 8192
          %279 = vsyncadd [#allocation7], %s278
          %s280 = sshll.u32 [#allocation6], 4
          %s281 = int_to_ptr.vmem [resolvable:$true] %s280
          %286 = dma.hbm_to_vmem [thread:$0]  %s5, 8192, %s281, [#allocation7], 128, 128, 8
        $region32: #{tpu_custom_call.1} parent=11 // pred_fallthru
          _
        // Predicated region
        $region33: #{tpu_custom_call.1} parent=11 // pred_check
          %p287 = pneg %p185
        $region34: #{tpu_custom_call.1} parent=11 // pred_check_branch
          %289 = sbr.rel (%p287) target = $region36
        $region35: #{tpu_custom_call.1} parent=11 // pred_region
          _
        $region36: #{tpu_custom_call.1} parent=11 // pred_fallthru
          _
      $region12: #{tpu_custom_call.1} parent=5 // pred_fallthru
        _
      %p290 = scmp.lt.s32.totalorder %s19, 2
      // Predicated region
      $region37: #{tpu_custom_call.1} parent=5 // pred_check
        %p291 = pneg %p290
      $region38: #{tpu_custom_call.1} parent=5 // pred_check_branch
        %293 = sbr.rel (%p291) target = $region40
      $region39: #{tpu_custom_call.1} parent=5 // pred_region
        // Predicated region
        $region41: #{tpu_custom_call.1} parent=39 // pred_check
          %p294 = pneg %p53
        $region42: #{tpu_custom_call.1} parent=39 // pred_check_branch
          %296 = sbr.rel (%p294) target = $region44
        $region43: #{tpu_custom_call.1} parent=39 // pred_region
          %s297 = smul.u32 8, %s27
          %p298 = scmp.lt.s32.totalorder %s26, 1
          %s299 = scalar_select %p298, %s26, 1
          %p300 = scmp.lt.s32.totalorder %s297, 7
          %s301 = scalar_select %p300, %s297, 7
          %s302 = smul.addr %s299, 8
          %s303 = sadd.s32 %s301, %s302
          %s304 = smul.addr %s303, 4
          %s305 = scalar_lea.vmem %s0, %s304
          %s306 = smul.u32 8, %s27
        $region44: #{tpu_custom_call.1} parent=39 // pred_fallthru
          _
        // Predicated region
        $region45: #{tpu_custom_call.1} parent=39 // pred_check
          %p307 = pneg %p205
        $region46: #{tpu_custom_call.1} parent=39 // pred_check_branch
          %309 = sbr.rel (%p307) target = $region48
        $region47: #{tpu_custom_call.1} parent=39 // pred_region
          %p310 = scmp.lt.s32.totalorder %s26, 1
          %s311 = scalar_select %p310, %s26, 1
          %s312 = smul.addr %s311, 4
          %s313 = scalar_lea.vmem %s7, %s312
        $region48: #{tpu_custom_call.1} parent=39 // pred_fallthru
          _
      $region40: #{tpu_custom_call.1} parent=5 // pred_fallthru
        _
      %p314 = scmp.le.s32.totalorder 1, %s19
      %p315 = scmp.lt.s32.totalorder %s19, 3
      %p316 = pnand %p314, %p315
      %p317 = pneg %p316
      // Predicated region
      $region49: #{tpu_custom_call.1} parent=5 // pred_check
        _
      $region50: #{tpu_custom_call.1} parent=5 // pred_check_branch
        %319 = sbr.rel (%p316) target = $region52
      $region51: #{tpu_custom_call.1} parent=5 // pred_region
        %s320 = ssub.s32 %s19, 1
        // Predicated region
        $region53: #{tpu_custom_call.1} parent=51 // pred_check
          %p321 = pneg %p122
        $region54: #{tpu_custom_call.1} parent=51 // pred_check_branch
          %323 = sbr.rel (%p321) target = $region56
        $region55: #{tpu_custom_call.1} parent=51 // pred_region
          %324 = dma.done [#allocation4], 8192
        $region56: #{tpu_custom_call.1} parent=51 // pred_fallthru
          _
        // Predicated region
        $region57: #{tpu_custom_call.1} parent=51 // pred_check
          %p325 = pneg %p164
        $region58: #{tpu_custom_call.1} parent=51 // pred_check_branch
          %327 = sbr.rel (%p325) target = $region60
        $region59: #{tpu_custom_call.1} parent=51 // pred_region
          %328 = dma.done [#allocation7], 8192
        $region60: #{tpu_custom_call.1} parent=51 // pred_fallthru
          _
        %s329 = smul.u32 8, %s29
        %p330 = scmp.lt.s32.totalorder %s28, 1
        %s331 = scalar_select %p330, %s28, 1
        %p332 = scmp.lt.s32.totalorder %s329, 7
        %s333 = scalar_select %p332, %s329, 7
        %s334 = smul.addr %s331, 8
        %s335 = sadd.s32 %s333, %s334
        %s336 = smul.addr %s335, 4
        %s337 = scalar_lea.vmem %s0, %s336
        %p338 = pneg %p59
        %p339 = pneg %p56
        %p340 = pneg %p80
        %p341 = pneg %p77
        %p342 = pneg %p101
        %p343 = pneg %p98
        %p344 = pneg %p122
        %p345 = pneg %p119
        %p346 = pneg %p143
        %p347 = pneg %p140
        %p348 = pneg %p164
        %p349 = pneg %p161
        %p350 = pneg %p185
        %p351 = pneg %p182
        %p352 = scmp.lt.s32.totalorder %s28, 1
        %s353 = scalar_select %p352, %s28, 1
        %s354 = smul.addr %s353, 4
        %s355 = scalar_lea.vmem %s7, %s354
        %p356 = pneg %p211
        %p357 = pneg %p208
        %p358 = pneg %p237
        %p359 = pneg %p234
        %s360 = sand.u32 %s224, 1
        %s361 = scalar_lea.sflag [#allocation5], %s360
        %s362 = sand.u32 %s224, 1
        %s363 = scalar_lea.vmem [#allocation8], %s362
        %s364 = smul.u32 8, %s29
        %p365 = scmp.lt.s32.totalorder %s28, 1
        %s366 = scalar_select %p365, %s28, 1
        %p367 = scmp.lt.s32.totalorder %s364, 7
        %s368 = scalar_select %p367, %s364, 7
        %s369 = smul.addr %s366, 8
        %s370 = sadd.s32 %s368, %s369
        %s371 = smul.addr %s370, 4
        %s372 = scalar_lea.vmem %s0, %s371
        %s373 = smul.u32 8, %s29
        %p374 = scmp.lt.s32.totalorder %s28, 1
        %s375 = scalar_select %p374, %s28, 1
        %s376 = smul.addr %s375, 4
        %s377 = scalar_lea.vmem %s7, %s376
        %p379 = scmp.eq.s32.totalorder %s29, 0
        // Predicated region
        $region61: #{tpu_custom_call.1} parent=51 // pred_check
          %p380 = pneg %p379
        $region62: #{tpu_custom_call.1} parent=51 // pred_check_branch
          %382 = sbr.rel (%p380) target = $region64
        $region63: #{tpu_custom_call.1} parent=51 // pred_region
          %383 = vst [vmem:[#allocation2] sm:$0x1] 0.0
        $region64: #{tpu_custom_call.1} parent=51 // pred_fallthru
          _
        %v384 = vld [vmem:[%s372] sm:$0xf]
        %v385 = vld [vmem:[%s372 + $0x4] sm:$0xf]
        %v386 = vld [vmem:[%s372 + $0x8] sm:$0xf]
        %v387 = vld [vmem:[%s372 + $0xc] sm:$0xf]
        %v388 = vld [vmem:[%s372 + $0x10] sm:$0xf]
        %v389 = vld [vmem:[%s372 + $0x14] sm:$0xf]
        %v390 = vld [vmem:[%s372 + $0x18] sm:$0xf]
        %v391 = vld [vmem:[%s372 + $0x1c] sm:$0xf]
        %v392 = vld [vmem:[%s1] sm:$0xf]
        %v393 = vld [vmem:[%s1 + $0x4] sm:$0xf]
        %v394 = vld [vmem:[%s1 + $0x8] sm:$0xf]
        %v395 = vld [vmem:[%s1 + $0xc] sm:$0xf]
        %v396 = vld [vmem:[%s2] sm:$0x1]
        %v398 = vlaneseq
        %v399 = vshrl.u32 %v398, 7
        %v400 = vsub.s32 0, %v399
        %v401 = vrot.slane %v396, %v400
        %v411 = vunpack.c.l.b16 %v384
        %v412 = vunpack.c.l.b16 %v385
        %v413 = vunpack.c.l.b16 %v386
        %v414 = vunpack.c.l.b16 %v387
        %v415 = vunpack.c.l.b16 %v388
        %v416 = vunpack.c.l.b16 %v389
        %v417 = vunpack.c.l.b16 %v390
        %v418 = vunpack.c.l.b16 %v391
        %v419 = vpack.c.b16 %v412, %v411
        %v420 = vpack.c.b16 %v414, %v413
        %v421 = vpack.c.b16 %v416, %v415
        %v422 = vpack.c.b16 %v418, %v417
        %v427 = vunpack.c.l.b16 %v392
        %v428 = vunpack.c.l.b16 %v393
        %v429 = vunpack.c.l.b16 %v394
        %v430 = vunpack.c.l.b16 %v395
        %v431 = vpack.c.b16 %v428, %v427
        %v432 = vpack.c.b16 %v430, %v429
        %vm435 = vcmask 261120
        %v437 = vsel %vm435, %v419, 0
        %v440 = vsel %vm435, %v420, 0
        %v443 = vsel %vm435, %v421, 0
        %v446 = vsel %vm435, %v422, 0
        %448 = vmatprep.subr.bf16.mxu0 0
        %449 = vmatpush1.bf16.msra.mxu0 %v431
        %450 = vmatprep.subr.bf16.mxu0 0
        %451 = vmatpush1.bf16.msra.mxu0 %v432
        %452 = vmatprep.subr.bf16.mxu0 0
        %453 = vmatpush1.bf16.msra.mxu0 0
        %454 = vmatprep.subr.bf16.mxu0 0
        %455 = vmatpush1.bf16.msra.mxu0 0
        %456 = vmatprep.subr.bf16.mxu0 0
        %457 = vmatpush1.bf16.msra.mxu0 0
        %458 = vmatprep.subr.bf16.mxu0 0
        %459 = vmatpush1.bf16.msra.mxu0 0
        %460 = vmatprep.subr.bf16.mxu0 0
        %461 = vmatpush1.bf16.msra.mxu0 0
        %462 = vmatprep.subr.bf16.mxu0 0
        %463 = vmatpush1.bf16.msra.mxu0 0
        %464 = vmatprep.subr.bf16.mxu0 0
        %465 = vmatpush1.bf16.msra.mxu0 0
        %466 = vmatprep.subr.bf16.mxu0 0
        %467 = vmatpush1.bf16.msra.mxu0 0
        %468 = vmatprep.subr.bf16.mxu0 0
        %469 = vmatpush1.bf16.msra.mxu0 0
        %470 = vmatprep.subr.bf16.mxu0 0
        %471 = vmatpush1.bf16.msra.mxu0 0
        %472 = vmatprep.subr.bf16.mxu0 0
        %473 = vmatpush1.bf16.msra.mxu0 0
        %474 = vmatprep.subr.bf16.mxu0 0
        %475 = vmatpush1.bf16.msra.mxu0 0
        %476 = vmatprep.subr.bf16.mxu0 0
        %477 = vmatpush1.bf16.msra.mxu0 0
        %478 = vmatprep.subr.bf16.mxu0 0
        %479 = vmatpush1.bf16.msra.mxu0 0
        %480 = vmatprep.mubr.bf16.mxu0 0
        %481 = vmatmul.mubr.bf16.gmra.mrb[0].mxu0 %v437
        %v482 = vpop.f32.mrb[0].mxu0
        %v483 = vadd.f32 %v401, %v482
        %v484 = vpop.f32.mrb[0].mxu0
        %v485 = vpop.f32.mrb[0].mxu0
        %v486 = vadd.f32 %v401, %v485
        %v487 = vpop.f32.mrb[0].mxu0
        %488 = vmatprep.mubr.bf16.mxu0 0
        %489 = vmatmul.mubr.bf16.gmra.mrb[0].mxu0 %v440
        %v490 = vpop.f32.mrb[0].mxu0
        %v491 = vadd.f32 %v401, %v490
        %v492 = vpop.f32.mrb[0].mxu0
        %v493 = vpop.f32.mrb[0].mxu0
        %v494 = vadd.f32 %v401, %v493
        %v495 = vpop.f32.mrb[0].mxu0
        %496 = vmatprep.mubr.bf16.mxu0 0
        %497 = vmatmul.mubr.bf16.gmra.mrb[0].mxu0 %v443
        %v498 = vpop.f32.mrb[0].mxu0
        %v499 = vadd.f32 %v401, %v498
        %v500 = vpop.f32.mrb[0].mxu0
        %v501 = vpop.f32.mrb[0].mxu0
        %v502 = vadd.f32 %v401, %v501
        %v503 = vpop.f32.mrb[0].mxu0
        %504 = vmatprep.mubr.bf16.mxu0 0
        %505 = vmatmul.mubr.bf16.gmra.mrb[0].mxu0 %v446
        %v506 = vpop.f32.mrb[0].mxu0
        %v507 = vadd.f32 %v401, %v506
        %v508 = vpop.f32.mrb[0].mxu0
        %v509 = vpop.f32.mrb[0].mxu0
        %v510 = vadd.f32 %v401, %v509
        %v511 = vpop.f32.mrb[0].mxu0
        %512 = vdwg.mxu0
        %v513 = vxor.u32 %v483, 2147483648
        %v514 = vxor.u32 %v486, 2147483648
        %v515 = vxor.u32 %v491, 2147483648
        %v516 = vxor.u32 %v494, 2147483648
        %v517 = vxor.u32 %v499, 2147483648
        %v518 = vxor.u32 %v502, 2147483648
        %v519 = vxor.u32 %v507, 2147483648
        %v520 = vxor.u32 %v510, 2147483648
        %v521 = vmul.f32 %v513, 1.442695
        %v522 = vpow.pop %v521
        %v523 = vmul.f32 %v514, 1.442695
        %v524 = vpow.pop %v523
        %v525 = vmul.f32 %v515, 1.442695
        %v526 = vpow.pop %v525
        %v527 = vmul.f32 %v516, 1.442695
        %v528 = vpow.pop %v527
        %v529 = vmul.f32 %v517, 1.442695
        %v530 = vpow.pop %v529
        %v531 = vmul.f32 %v518, 1.442695
        %v532 = vpow.pop %v531
        %v533 = vmul.f32 %v519, 1.442695
        %v534 = vpow.pop %v533
        %v535 = vmul.f32 %v520, 1.442695
        %v536 = vpow.pop %v535
        %v537 = vadd.f32 %v522, 1.0
        %v538 = vadd.f32 %v524, 1.0
        %v539 = vadd.f32 %v526, 1.0
        %v540 = vadd.f32 %v528, 1.0
        %v541 = vadd.f32 %v530, 1.0
        %v542 = vadd.f32 %v532, 1.0
        %v543 = vadd.f32 %v534, 1.0
        %v544 = vadd.f32 %v536, 1.0
        %v545 = vrcp.pop %v537
        %v546 = vmul.f32 1.0, %v545
        %v547 = vrcp.pop %v538
        %v548 = vmul.f32 1.0, %v547
        %v549 = vrcp.pop %v539
        %v550 = vmul.f32 1.0, %v549
        %v551 = vrcp.pop %v540
        %v552 = vmul.f32 1.0, %v551
        %v553 = vrcp.pop %v541
        %v554 = vmul.f32 1.0, %v553
        %v555 = vrcp.pop %v542
        %v556 = vmul.f32 1.0, %v555
        %v557 = vrcp.pop %v543
        %v558 = vmul.f32 1.0, %v557
        %v559 = vrcp.pop %v544
        %v560 = vmul.f32 1.0, %v559
        %v561 = vmul.f32 %v483, %v546
        %v562 = vmul.f32 %v486, %v548
        %v563 = vmul.f32 %v491, %v550
        %v564 = vmul.f32 %v494, %v552
        %v565 = vmul.f32 %v499, %v554
        %v566 = vmul.f32 %v502, %v556
        %v567 = vmul.f32 %v507, %v558
        %v568 = vmul.f32 %v510, %v560
        %v569 = vld [vmem:[#allocation2] sm:$0x1]
        %v570 = vadd.f32 %v561, %v562
        %v571 = vadd.f32 %v570, %v563
        %v572 = vadd.f32 %v571, %v564
        %v573 = vadd.f32 %v572, %v565
        %v574 = vadd.f32 %v573, %v566
        %v575 = vadd.f32 %v574, %v567
        %v576 = vadd.f32 %v575, %v568
        %v577 = vrot.slane %v576, 4
        %v578 = vadd.f32 %v576, %v577
        %v579 = vrot.slane %v578, 2
        %v580 = vadd.f32 %v578, %v579
        %v581 = vrot.slane %v580, 1
        %v582 = vadd.f32 %v580, %v581
        %v583 = vadd.f32 %v569, %v582
        %584 = vst [vmem:[#allocation2] sm:$0x1] %v583
        // Predicated region
        $region65: #{tpu_custom_call.1} parent=51 // pred_check
          %p585 = pneg %p379
        $region66: #{tpu_custom_call.1} parent=51 // pred_check_branch
          %587 = sbr.rel (%p585) target = $region68
        $region67: #{tpu_custom_call.1} parent=51 // pred_region
          %v588 = vld [vmem:[#allocation2] sm:$0x1]
          %v589 = vmul.f32 %v588, 0.015625
          %v590 = vld [vmem:[#allocation3] sm:$0xff]
          %v591 = vld [vmem:[#allocation3 + $0x8] sm:$0xff]
          %v592 = vld [vmem:[#allocation3 + $0x10] sm:$0xff]
          %v593 = vld [vmem:[#allocation3 + $0x18] sm:$0xff]
          %v594 = vld [vmem:[#allocation3 + $0x20] sm:$0xff]
          %v595 = vld [vmem:[#allocation3 + $0x28] sm:$0xff]
          %v596 = vld [vmem:[#allocation3 + $0x30] sm:$0xff]
          %v597 = vld [vmem:[#allocation3 + $0x38] sm:$0xff]
          %v598 = vld [vmem:[#allocation3 + $0x40] sm:$0xff]
          %v599 = vld [vmem:[#allocation3 + $0x48] sm:$0xff]
          %v600 = vld [vmem:[#allocation3 + $0x50] sm:$0xff]
          %v601 = vld [vmem:[#allocation3 + $0x58] sm:$0xff]
          %v602 = vld [vmem:[#allocation3 + $0x60] sm:$0xff]
          %v603 = vld [vmem:[#allocation3 + $0x68] sm:$0xff]
          %v604 = vld [vmem:[#allocation3 + $0x70] sm:$0xff]
          %v605 = vld [vmem:[#allocation3 + $0x78] sm:$0xff]
          %v606 = vld [vmem:[#allocation3 + $0x80] sm:$0xff]
          %v607 = vld [vmem:[#allocation3 + $0x88] sm:$0xff]
          %v608 = vld [vmem:[#allocation3 + $0x90] sm:$0xff]
          %v609 = vld [vmem:[#allocation3 + $0x98] sm:$0xff]
          %v610 = vld [vmem:[#allocation3 + $0xa0] sm:$0xff]
          %v611 = vld [vmem:[#allocation3 + $0xa8] sm:$0xff]
          %v612 = vld [vmem:[#allocation3 + $0xb0] sm:$0xff]
          %v613 = vld [vmem:[#allocation3 + $0xb8] sm:$0xff]
          %v614 = vld [vmem:[#allocation3 + $0xc0] sm:$0xff]
          %v615 = vld [vmem:[#allocation3 + $0xc8] sm:$0xff]
          %v616 = vld [vmem:[#allocation3 + $0xd0] sm:$0xff]
          %v617 = vld [vmem:[#allocation3 + $0xd8] sm:$0xff]
          %v618 = vld [vmem:[#allocation3 + $0xe0] sm:$0xff]
          %v619 = vld [vmem:[#allocation3 + $0xe8] sm:$0xff]
          %v620 = vld [vmem:[#allocation3 + $0xf0] sm:$0xff]
          %v621 = vld [vmem:[#allocation3 + $0xf8] sm:$0xff]
          %v622 = vld [vmem:[#allocation3 + $0x100] sm:$0xff]
          %v623 = vld [vmem:[#allocation3 + $0x108] sm:$0xff]
          %v624 = vld [vmem:[#allocation3 + $0x110] sm:$0xff]
          %v625 = vld [vmem:[#allocation3 + $0x118] sm:$0xff]
          %v626 = vld [vmem:[#allocation3 + $0x120] sm:$0xff]
          %v627 = vld [vmem:[#allocation3 + $0x128] sm:$0xff]
          %v628 = vld [vmem:[#allocation3 + $0x130] sm:$0xff]
          %v629 = vld [vmem:[#allocation3 + $0x138] sm:$0xff]
          %v630 = vld [vmem:[#allocation3 + $0x140] sm:$0xff]
          %v631 = vld [vmem:[#allocation3 + $0x148] sm:$0xff]
          %v632 = vld [vmem:[#allocation3 + $0x150] sm:$0xff]
          %v633 = vld [vmem:[#allocation3 + $0x158] sm:$0xff]
          %v634 = vld [vmem:[#allocation3 + $0x160] sm:$0xff]
          %v635 = vld [vmem:[#allocation3 + $0x168] sm:$0xff]
          %v636 = vld [vmem:[#allocation3 + $0x170] sm:$0xff]
          %v637 = vld [vmem:[#allocation3 + $0x178] sm:$0xff]
          %v638 = vld [vmem:[#allocation3 + $0x180] sm:$0xff]
          %v639 = vld [vmem:[#allocation3 + $0x188] sm:$0xff]
          %v640 = vld [vmem:[#allocation3 + $0x190] sm:$0xff]
          %v641 = vld [vmem:[#allocation3 + $0x198] sm:$0xff]
          %v642 = vld [vmem:[#allocation3 + $0x1a0] sm:$0xff]
          %v643 = vld [vmem:[#allocation3 + $0x1a8] sm:$0xff]
          %v644 = vld [vmem:[#allocation3 + $0x1b0] sm:$0xff]
          %v645 = vld [vmem:[#allocation3 + $0x1b8] sm:$0xff]
          %v646 = vld [vmem:[#allocation3 + $0x1c0] sm:$0xff]
          %v647 = vld [vmem:[#allocation3 + $0x1c8] sm:$0xff]
          %v648 = vld [vmem:[#allocation3 + $0x1d0] sm:$0xff]
          %v649 = vld [vmem:[#allocation3 + $0x1d8] sm:$0xff]
          %v650 = vld [vmem:[#allocation3 + $0x1e0] sm:$0xff]
          %v651 = vld [vmem:[#allocation3 + $0x1e8] sm:$0xff]
          %v652 = vld [vmem:[#allocation3 + $0x1f0] sm:$0xff]
          %v653 = vld [vmem:[#allocation3 + $0x1f8] sm:$0xff]
          %v654 = vld [vmem:[%s4] sm:$0xf]
          %v656 = vlaneseq
          %v657 = vshrl.u32 %v656, 7
          %v658 = vsub.s32 0, %v657
          %v659 = vrot.slane %v654, %v658
          %v660 = vlaneseq
          %v661 = vshrl.u32 %v660, 7
          %v662 = vsub.s32 1, %v661
          %v663 = vrot.slane %v654, %v662
          %v664 = vlaneseq
          %v665 = vshrl.u32 %v664, 7
          %v666 = vsub.s32 2, %v665
          %v667 = vrot.slane %v654, %v666
          %v668 = vlaneseq
          %v669 = vshrl.u32 %v668, 7
          %v670 = vsub.s32 3, %v669
          %v671 = vrot.slane %v654, %v670
          %676 = vmatprep.subr.mxu0 %v591
          %677 = vmatpush1.msra.mxu0 %v590
          %678 = vmatprep.subr.mxu0 %v595
          %679 = vmatpush1.msra.mxu0 %v594
          %680 = vmatprep.subr.mxu0 %v599
          %681 = vmatpush1.msra.mxu0 %v598
          %682 = vmatprep.subr.mxu0 %v603
          %683 = vmatpush1.msra.mxu0 %v602
          %684 = vmatprep.subr.mxu0 %v607
          %685 = vmatpush1.msra.mxu0 %v606
          %686 = vmatprep.subr.mxu0 %v611
          %687 = vmatpush1.msra.mxu0 %v610
          %688 = vmatprep.subr.mxu0 %v615
          %689 = vmatpush1.msra.mxu0 %v614
          %690 = vmatprep.subr.mxu0 %v619
          %691 = vmatpush1.msra.mxu0 %v618
          %692 = vmatprep.subr.mxu0 %v623
          %693 = vmatpush1.msra.mxu0 %v622
          %694 = vmatprep.subr.mxu0 %v627
          %695 = vmatpush1.msra.mxu0 %v626
          %696 = vmatprep.subr.mxu0 %v631
          %697 = vmatpush1.msra.mxu0 %v630
          %698 = vmatprep.subr.mxu0 %v635
          %699 = vmatpush1.msra.mxu0 %v634
          %700 = vmatprep.subr.mxu0 %v639
          %701 = vmatpush1.msra.mxu0 %v638
          %702 = vmatprep.subr.mxu0 %v643
          %703 = vmatpush1.msra.mxu0 %v642
          %704 = vmatprep.subr.mxu0 %v647
          %705 = vmatpush1.msra.mxu0 %v646
          %706 = vmatprep.subr.mxu0 %v651
          %707 = vmatpush1.msra.mxu0 %v650
          %708 = vmatprep.subr.mxu0 0.0
          %709 = vmatpush1.msra.mxu0 0.0
          %710 = vmatprep.subr.mxu0 0.0
          %711 = vmatpush1.msra.mxu0 0.0
          %712 = vmatprep.subr.mxu0 0.0
          %713 = vmatpush1.msra.mxu0 0.0
          %714 = vmatprep.subr.mxu0 0.0
          %715 = vmatpush1.msra.mxu0 0.0
          %716 = vmatprep.subr.mxu0 0.0
          %717 = vmatpush1.msra.mxu0 0.0
          %718 = vmatprep.subr.mxu0 0.0
          %719 = vmatpush1.msra.mxu0 0.0
          %720 = vmatprep.subr.mxu0 0.0
          %721 = vmatpush1.msra.mxu0 0.0
          %722 = vmatprep.subr.mxu0 0.0
          %723 = vmatpush1.msra.mxu0 0.0
          %724 = vmatprep.subr.mxu0 0.0
          %725 = vmatpush1.msra.mxu0 0.0
          %726 = vmatprep.subr.mxu0 0.0
          %727 = vmatpush1.msra.mxu0 0.0
          %728 = vmatprep.subr.mxu0 0.0
          %729 = vmatpush1.msra.mxu0 0.0
          %730 = vmatprep.subr.mxu0 0.0
          %731 = vmatpush1.msra.mxu0 0.0
          %732 = vmatprep.subr.mxu0 0.0
          %733 = vmatpush1.msra.mxu0 0.0
          %734 = vmatprep.subr.mxu0 0.0
          %735 = vmatpush1.msra.mxu0 0.0
          %736 = vmatprep.subr.mxu0 0.0
          %737 = vmatpush1.msra.mxu0 0.0
          %738 = vmatprep.subr.mxu0 0.0
          %739 = vmatpush1.msra.mxu0 0.0
          %740 = vmatprep.mubr.f32.mxu0 0.0
          %741 = vmatmul.mubr.f32.gmra.mrb[0].mxu0 %v589
          %v742 = vpop.f32.mrb[0].mxu0
          %v743 = vadd.f32 %v659, %v742
          %v744 = vpop.f32.mrb[0].mxu0
          %v745 = vadd.f32 %v663, %v744
          %746 = vdwg.mxu0
          %747 = vmatprep.subr.mxu0 %v593
          %748 = vmatpush1.msra.mxu0 %v592
          %749 = vmatprep.subr.mxu0 %v597
          %750 = vmatpush1.msra.mxu0 %v596
          %751 = vmatprep.subr.mxu0 %v601
          %752 = vmatpush1.msra.mxu0 %v600
          %753 = vmatprep.subr.mxu0 %v605
          %754 = vmatpush1.msra.mxu0 %v604
          %755 = vmatprep.subr.mxu0 %v609
          %756 = vmatpush1.msra.mxu0 %v608
          %757 = vmatprep.subr.mxu0 %v613
          %758 = vmatpush1.msra.mxu0 %v612
          %759 = vmatprep.subr.mxu0 %v617
          %760 = vmatpush1.msra.mxu0 %v616
          %761 = vmatprep.subr.mxu0 %v621
          %762 = vmatpush1.msra.mxu0 %v620
          %763 = vmatprep.subr.mxu0 %v625
          %764 = vmatpush1.msra.mxu0 %v624
          %765 = vmatprep.subr.mxu0 %v629
          %766 = vmatpush1.msra.mxu0 %v628
          %767 = vmatprep.subr.mxu0 %v633
          %768 = vmatpush1.msra.mxu0 %v632
          %769 = vmatprep.subr.mxu0 %v637
          %770 = vmatpush1.msra.mxu0 %v636
          %771 = vmatprep.subr.mxu0 %v641
          %772 = vmatpush1.msra.mxu0 %v640
          %773 = vmatprep.subr.mxu0 %v645
          %774 = vmatpush1.msra.mxu0 %v644
          %775 = vmatprep.subr.mxu0 %v649
          %776 = vmatpush1.msra.mxu0 %v648
          %777 = vmatprep.subr.mxu0 %v653
          %778 = vmatpush1.msra.mxu0 %v652
          %779 = vmatprep.subr.mxu0 0.0
          %780 = vmatpush1.msra.mxu0 0.0
          %781 = vmatprep.subr.mxu0 0.0
          %782 = vmatpush1.msra.mxu0 0.0
          %783 = vmatprep.subr.mxu0 0.0
          %784 = vmatpush1.msra.mxu0 0.0
          %785 = vmatprep.subr.mxu0 0.0
          %786 = vmatpush1.msra.mxu0 0.0
          %787 = vmatprep.subr.mxu0 0.0
          %788 = vmatpush1.msra.mxu0 0.0
          %789 = vmatprep.subr.mxu0 0.0
          %790 = vmatpush1.msra.mxu0 0.0
          %791 = vmatprep.subr.mxu0 0.0
          %792 = vmatpush1.msra.mxu0 0.0
          %793 = vmatprep.subr.mxu0 0.0
          %794 = vmatpush1.msra.mxu0 0.0
          %795 = vmatprep.subr.mxu0 0.0
          %796 = vmatpush1.msra.mxu0 0.0
          %797 = vmatprep.subr.mxu0 0.0
          %798 = vmatpush1.msra.mxu0 0.0
          %799 = vmatprep.subr.mxu0 0.0
          %800 = vmatpush1.msra.mxu0 0.0
          %801 = vmatprep.subr.mxu0 0.0
          %802 = vmatpush1.msra.mxu0 0.0
          %803 = vmatprep.subr.mxu0 0.0
          %804 = vmatpush1.msra.mxu0 0.0
          %805 = vmatprep.subr.mxu0 0.0
          %806 = vmatpush1.msra.mxu0 0.0
          %807 = vmatprep.subr.mxu0 0.0
          %808 = vmatpush1.msra.mxu0 0.0
          %809 = vmatprep.subr.mxu0 0.0
          %810 = vmatpush1.msra.mxu0 0.0
          %811 = vmatprep.mubr.f32.mxu0 0.0
          %812 = vmatmul.mubr.f32.gmra.mrb[0].mxu0 %v589
          %v813 = vpop.f32.mrb[0].mxu0
          %v814 = vadd.f32 %v667, %v813
          %v815 = vpop.f32.mrb[0].mxu0
          %v816 = vadd.f32 %v671, %v815
          %817 = vdwg.mxu0
          %v818 = vmax.f32 %v743, 0.0
          %v819 = vmax.f32 %v745, 0.0
          %v820 = vmax.f32 %v814, 0.0
          %v821 = vmax.f32 %v816, 0.0
          %v822 = vld [vmem:[%s377] sm:$0xf]
          %v824 = vlaneseq
          %v825 = vshrl.u32 %v824, 7
          %v826 = vsub.s32 0, %v825
          %v827 = vrot.slane %v822, %v826
          %v828 = vlaneseq
          %v829 = vshrl.u32 %v828, 7
          %v830 = vsub.s32 1, %v829
          %v831 = vrot.slane %v822, %v830
          %v832 = vlaneseq
          %v833 = vshrl.u32 %v832, 7
          %v834 = vsub.s32 2, %v833
          %v835 = vrot.slane %v822, %v834
          %v836 = vlaneseq
          %v837 = vshrl.u32 %v836, 7
          %v838 = vsub.s32 3, %v837
          %v839 = vrot.slane %v822, %v838
          %v844 = vmul.f32 %v818, %v827
          %v845 = vmul.f32 %v819, %v831
          %v846 = vmul.f32 %v820, %v835
          %v847 = vmul.f32 %v821, %v839
          %v848 = vld [vmem:[#allocation6] sm:$0xff]
          %v849 = vld [vmem:[#allocation6 + $0x8] sm:$0xff]
          %v850 = vld [vmem:[#allocation6 + $0x10] sm:$0xff]
          %v851 = vld [vmem:[#allocation6 + $0x18] sm:$0xff]
          %v852 = vld [vmem:[#allocation6 + $0x20] sm:$0xff]
          %v853 = vld [vmem:[#allocation6 + $0x28] sm:$0xff]
          %v854 = vld [vmem:[#allocation6 + $0x30] sm:$0xff]
          %v855 = vld [vmem:[#allocation6 + $0x38] sm:$0xff]
          %v856 = vld [vmem:[#allocation6 + $0x40] sm:$0xff]
          %v857 = vld [vmem:[#allocation6 + $0x48] sm:$0xff]
          %v858 = vld [vmem:[#allocation6 + $0x50] sm:$0xff]
          %v859 = vld [vmem:[#allocation6 + $0x58] sm:$0xff]
          %v860 = vld [vmem:[#allocation6 + $0x60] sm:$0xff]
          %v861 = vld [vmem:[#allocation6 + $0x68] sm:$0xff]
          %v862 = vld [vmem:[#allocation6 + $0x70] sm:$0xff]
          %v863 = vld [vmem:[#allocation6 + $0x78] sm:$0xff]
          %v864 = vld [vmem:[#allocation6 + $0x80] sm:$0xff]
          %v865 = vld [vmem:[#allocation6 + $0x88] sm:$0xff]
          %v866 = vld [vmem:[#allocation6 + $0x90] sm:$0xff]
          %v867 = vld [vmem:[#allocation6 + $0x98] sm:$0xff]
          %v868 = vld [vmem:[#allocation6 + $0xa0] sm:$0xff]
          %v869 = vld [vmem:[#allocation6 + $0xa8] sm:$0xff]
          %v870 = vld [vmem:[#allocation6 + $0xb0] sm:$0xff]
          %v871 = vld [vmem:[#allocation6 + $0xb8] sm:$0xff]
          %v872 = vld [vmem:[#allocation6 + $0xc0] sm:$0xff]
          %v873 = vld [vmem:[#allocation6 + $0xc8] sm:$0xff]
          %v874 = vld [vmem:[#allocation6 + $0xd0] sm:$0xff]
          %v875 = vld [vmem:[#allocation6 + $0xd8] sm:$0xff]
          %v876 = vld [vmem:[#allocation6 + $0xe0] sm:$0xff]
          %v877 = vld [vmem:[#allocation6 + $0xe8] sm:$0xff]
          %v878 = vld [vmem:[#allocation6 + $0xf0] sm:$0xff]
          %v879 = vld [vmem:[#allocation6 + $0xf8] sm:$0xff]
          %v880 = vld [vmem:[#allocation6 + $0x100] sm:$0xff]
          %v881 = vld [vmem:[#allocation6 + $0x108] sm:$0xff]
          %v882 = vld [vmem:[#allocation6 + $0x110] sm:$0xff]
          %v883 = vld [vmem:[#allocation6 + $0x118] sm:$0xff]
          %v884 = vld [vmem:[#allocation6 + $0x120] sm:$0xff]
          %v885 = vld [vmem:[#allocation6 + $0x128] sm:$0xff]
          %v886 = vld [vmem:[#allocation6 + $0x130] sm:$0xff]
          %v887 = vld [vmem:[#allocation6 + $0x138] sm:$0xff]
          %v888 = vld [vmem:[#allocation6 + $0x140] sm:$0xff]
          %v889 = vld [vmem:[#allocation6 + $0x148] sm:$0xff]
          %v890 = vld [vmem:[#allocation6 + $0x150] sm:$0xff]
          %v891 = vld [vmem:[#allocation6 + $0x158] sm:$0xff]
          %v892 = vld [vmem:[#allocation6 + $0x160] sm:$0xff]
          %v893 = vld [vmem:[#allocation6 + $0x168] sm:$0xff]
          %v894 = vld [vmem:[#allocation6 + $0x170] sm:$0xff]
          %v895 = vld [vmem:[#allocation6 + $0x178] sm:$0xff]
          %v896 = vld [vmem:[#allocation6 + $0x180] sm:$0xff]
          %v897 = vld [vmem:[#allocation6 + $0x188] sm:$0xff]
          %v898 = vld [vmem:[#allocation6 + $0x190] sm:$0xff]
          %v899 = vld [vmem:[#allocation6 + $0x198] sm:$0xff]
          %v900 = vld [vmem:[#allocation6 + $0x1a0] sm:$0xff]
          %v901 = vld [vmem:[#allocation6 + $0x1a8] sm:$0xff]
          %v902 = vld [vmem:[#allocation6 + $0x1b0] sm:$0xff]
          %v903 = vld [vmem:[#allocation6 + $0x1b8] sm:$0xff]
          %v904 = vld [vmem:[#allocation6 + $0x1c0] sm:$0xff]
          %v905 = vld [vmem:[#allocation6 + $0x1c8] sm:$0xff]
          %v906 = vld [vmem:[#allocation6 + $0x1d0] sm:$0xff]
          %v907 = vld [vmem:[#allocation6 + $0x1d8] sm:$0xff]
          %v908 = vld [vmem:[#allocation6 + $0x1e0] sm:$0xff]
          %v909 = vld [vmem:[#allocation6 + $0x1e8] sm:$0xff]
          %v910 = vld [vmem:[#allocation6 + $0x1f0] sm:$0xff]
          %v911 = vld [vmem:[#allocation6 + $0x1f8] sm:$0xff]
          %v912 = vld [vmem:[%s6] sm:$0x1]
          %913 = vmatprep.subr.mxu0 0.0
          %914 = vmatpush1.msra.mxu0 %v848
          %915 = vmatprep.subr.mxu0 0.0
          %916 = vmatpush1.msra.mxu0 %v849
          %917 = vmatprep.subr.mxu0 0.0
          %918 = vmatpush1.msra.mxu0 %v850
          %919 = vmatprep.subr.mxu0 0.0
          %920 = vmatpush1.msra.mxu0 %v851
          %921 = vmatprep.subr.mxu0 0.0
          %922 = vmatpush1.msra.mxu0 %v852
          %923 = vmatprep.subr.mxu0 0.0
          %924 = vmatpush1.msra.mxu0 %v853
          %925 = vmatprep.subr.mxu0 0.0
          %926 = vmatpush1.msra.mxu0 %v854
          %927 = vmatprep.subr.mxu0 0.0
          %928 = vmatpush1.msra.mxu0 %v855
          %929 = vmatprep.subr.mxu0 0.0
          %930 = vmatpush1.msra.mxu0 %v856
          %931 = vmatprep.subr.mxu0 0.0
          %932 = vmatpush1.msra.mxu0 %v857
          %933 = vmatprep.subr.mxu0 0.0
          %934 = vmatpush1.msra.mxu0 %v858
          %935 = vmatprep.subr.mxu0 0.0
          %936 = vmatpush1.msra.mxu0 %v859
          %937 = vmatprep.subr.mxu0 0.0
          %938 = vmatpush1.msra.mxu0 %v860
          %939 = vmatprep.subr.mxu0 0.0
          %940 = vmatpush1.msra.mxu0 %v861
          %941 = vmatprep.subr.mxu0 0.0
          %942 = vmatpush1.msra.mxu0 %v862
          %943 = vmatprep.subr.mxu0 0.0
          %944 = vmatpush1.msra.mxu0 %v863
          %945 = vmatprep.subr.mxu0 0.0
          %946 = vmatpush1.msra.mxu0 %v864
          %947 = vmatprep.subr.mxu0 0.0
          %948 = vmatpush1.msra.mxu0 %v865
          %949 = vmatprep.subr.mxu0 0.0
          %950 = vmatpush1.msra.mxu0 %v866
          %951 = vmatprep.subr.mxu0 0.0
          %952 = vmatpush1.msra.mxu0 %v867
          %953 = vmatprep.subr.mxu0 0.0
          %954 = vmatpush1.msra.mxu0 %v868
          %955 = vmatprep.subr.mxu0 0.0
          %956 = vmatpush1.msra.mxu0 %v869
          %957 = vmatprep.subr.mxu0 0.0
          %958 = vmatpush1.msra.mxu0 %v870
          %959 = vmatprep.subr.mxu0 0.0
          %960 = vmatpush1.msra.mxu0 %v871
          %961 = vmatprep.subr.mxu0 0.0
          %962 = vmatpush1.msra.mxu0 %v872
          %963 = vmatprep.subr.mxu0 0.0
          %964 = vmatpush1.msra.mxu0 %v873
          %965 = vmatprep.subr.mxu0 0.0
          %966 = vmatpush1.msra.mxu0 %v874
          %967 = vmatprep.subr.mxu0 0.0
          %968 = vmatpush1.msra.mxu0 %v875
          %969 = vmatprep.subr.mxu0 0.0
          %970 = vmatpush1.msra.mxu0 %v876
          %971 = vmatprep.subr.mxu0 0.0
          %972 = vmatpush1.msra.mxu0 %v877
          %973 = vmatprep.subr.mxu0 0.0
          %974 = vmatpush1.msra.mxu0 %v878
          %975 = vmatprep.subr.mxu0 0.0
          %976 = vmatpush1.msra.mxu0 %v879
          %977 = vmatprep.mubr.f32.mxu0 %v845
          %978 = vmatmul.mubr.f32.gmra.mrb[0].mxu0 %v844
          %v979 = vpop.f32.mrb[0].mxu0
          %v980 = vadd.f32 %v912, %v979
          %v981 = vpop.f32.mrb[0].mxu0
          %982 = vdwg.mxu0
          %983 = vmatprep.subr.mxu0 0.0
          %984 = vmatpush1.msra.mxu0 %v880
          %985 = vmatprep.subr.mxu0 0.0
          %986 = vmatpush1.msra.mxu0 %v881
          %987 = vmatprep.subr.mxu0 0.0
          %988 = vmatpush1.msra.mxu0 %v882
          %989 = vmatprep.subr.mxu0 0.0
          %990 = vmatpush1.msra.mxu0 %v883
          %991 = vmatprep.subr.mxu0 0.0
          %992 = vmatpush1.msra.mxu0 %v884
          %993 = vmatprep.subr.mxu0 0.0
          %994 = vmatpush1.msra.mxu0 %v885
          %995 = vmatprep.subr.mxu0 0.0
          %996 = vmatpush1.msra.mxu0 %v886
          %997 = vmatprep.subr.mxu0 0.0
          %998 = vmatpush1.msra.mxu0 %v887
          %999 = vmatprep.subr.mxu0 0.0
          %1000 = vmatpush1.msra.mxu0 %v888
          %1001 = vmatprep.subr.mxu0 0.0
          %1002 = vmatpush1.msra.mxu0 %v889
          %1003 = vmatprep.subr.mxu0 0.0
          %1004 = vmatpush1.msra.mxu0 %v890
          %1005 = vmatprep.subr.mxu0 0.0
          %1006 = vmatpush1.msra.mxu0 %v891
          %1007 = vmatprep.subr.mxu0 0.0
          %1008 = vmatpush1.msra.mxu0 %v892
          %1009 = vmatprep.subr.mxu0 0.0
          %1010 = vmatpush1.msra.mxu0 %v893
          %1011 = vmatprep.subr.mxu0 0.0
          %1012 = vmatpush1.msra.mxu0 %v894
          %1013 = vmatprep.subr.mxu0 0.0
          %1014 = vmatpush1.msra.mxu0 %v895
          %1015 = vmatprep.subr.mxu0 0.0
          %1016 = vmatpush1.msra.mxu0 %v896
          %1017 = vmatprep.subr.mxu0 0.0
          %1018 = vmatpush1.msra.mxu0 %v897
          %1019 = vmatprep.subr.mxu0 0.0
          %1020 = vmatpush1.msra.mxu0 %v898
          %1021 = vmatprep.subr.mxu0 0.0
          %1022 = vmatpush1.msra.mxu0 %v899
          %1023 = vmatprep.subr.mxu0 0.0
          %1024 = vmatpush1.msra.mxu0 %v900
          %1025 = vmatprep.subr.mxu0 0.0
          %1026 = vmatpush1.msra.mxu0 %v901
          %1027 = vmatprep.subr.mxu0 0.0
          %1028 = vmatpush1.msra.mxu0 %v902
          %1029 = vmatprep.subr.mxu0 0.0
          %1030 = vmatpush1.msra.mxu0 %v903
          %1031 = vmatprep.subr.mxu0 0.0
          %1032 = vmatpush1.msra.mxu0 %v904
          %1033 = vmatprep.subr.mxu0 0.0
          %1034 = vmatpush1.msra.mxu0 %v905
          %1035 = vmatprep.subr.mxu0 0.0
          %1036 = vmatpush1.msra.mxu0 %v906
          %1037 = vmatprep.subr.mxu0 0.0
          %1038 = vmatpush1.msra.mxu0 %v907
          %1039 = vmatprep.subr.mxu0 0.0
          %1040 = vmatpush1.msra.mxu0 %v908
          %1041 = vmatprep.subr.mxu0 0.0
          %1042 = vmatpush1.msra.mxu0 %v909
          %1043 = vmatprep.subr.mxu0 0.0
          %1044 = vmatpush1.msra.mxu0 %v910
          %1045 = vmatprep.subr.mxu0 0.0
          %1046 = vmatpush1.msra.mxu0 %v911
          %1047 = vmatprep.mubr.f32.mxu0 %v847
          %1048 = vmatmul.mubr.f32.gmra.mrb[0].mxu0 %v846
          %v1049 = vpop.f32.mrb[0].mxu0
          %v1050 = vadd.f32 %v980, %v1049
          %v1051 = vpop.f32.mrb[0].mxu0
          %1052 = vdwg.mxu0
          %1053 = vst [vmem:[%s363] sm:$0x1] %v1050
        $region68: #{tpu_custom_call.1} parent=51 // pred_fallthru
          _
        %s1054 = sand.u32 %s224, 1
        %s1055 = scalar_lea.sflag [#allocation5], %s1054
        %s1056 = sand.u32 %s224, 1
        %s1057 = scalar_lea.vmem [#allocation8], %s1056
        // Predicated region
        $region69: #{tpu_custom_call.1} parent=51 // pred_check
          %p1058 = pneg %p234
        $region70: #{tpu_custom_call.1} parent=51 // pred_check_branch
          %1060 = sbr.rel (%p1058) target = $region72
        $region71: #{tpu_custom_call.1} parent=51 // pred_region
          %s1062 = ssub.s32 16, 16
          %1063 = vsyncadd %s1055, %s1062
          %s1064 = smul.addr %s28, 16
          %s1065 = scalar_lea.hbm %s8, %s1064
          %s1067 = sshll.u32 %s1057, 4
          %s1068 = int_to_ptr.vmem [resolvable:$true] %s1067
          %1070 = dma.vmem_to_hbm [thread:$0]  %s1068, 16, %s1065, %s1055
        $region72: #{tpu_custom_call.1} parent=51 // pred_fallthru
          _
      $region52: #{tpu_custom_call.1} parent=5 // pred_fallthru
        _
      %p1071 = scmp.le.s32.totalorder 2, %s19
      // Predicated region
      $region73: #{tpu_custom_call.1} parent=5 // pred_check
        %p1072 = pneg %p1071
      $region74: #{tpu_custom_call.1} parent=5 // pred_check_branch
        %1074 = sbr.rel (%p1072) target = $region76
      $region75: #{tpu_custom_call.1} parent=5 // pred_region
        %s1075 = ssub.s32 %s19, 2
        // Predicated region
        $region77: #{tpu_custom_call.1} parent=75 // pred_check
          %p1076 = pneg %p240
        $region78: #{tpu_custom_call.1} parent=75 // pred_check_branch
          %1078 = sbr.rel (%p1076) target = $region80
        $region79: #{tpu_custom_call.1} parent=75 // pred_region
          %s1079 = sand.u32 %s225, 1
          %s1080 = scalar_lea.sflag [#allocation5], %s1079
          %s1081 = sand.u32 %s225, 1
          %s1082 = scalar_lea.vmem [#allocation8], %s1081
          %1083 = dma.done %s1080, 16
        $region80: #{tpu_custom_call.1} parent=75 // pred_fallthru
          _
      $region76: #{tpu_custom_call.1} parent=5 // pred_fallthru
        _
    $region6: #{tpu_custom_call.1} parent=1 // loop_footer
      %s23 = sadd.s32 1, %s19
    $region7: #{tpu_custom_call.1} parent=1 // loop_footer_branch
      %18 = sbr.rel target = $region3
    $region8: #{tpu_custom_call.1} parent=1 // loop_exit
      _
    %1084 = vsyncpa [#allocation4], 1
    %s1085 = scalar_lea.sflag [#allocation4], 1
    %1086 = vsyncpa %s1085, 1
    %1087 = vsyncpa [#allocation7], 1
    %1088 = vsyncpa [#allocation5], 1
    %s1089 = scalar_lea.sflag [#allocation5], 1
    %1090 = vsyncpa %s1089, 1

</llo_original>
